<compile_context>
chip_gen: v7x
topology: tpu7x:2x2x1
jax: 0.10.0
libtpu: 0.0.40
codegen_flags: <defaults>
</compile_context>

<pallas_src>
import functools

import jax
import jax.numpy as jnp
from jax.experimental import pallas as pl
from jax.experimental.pallas import tpu as pltpu


HIDDEN = 256


def _round_up(n, m):
    return ((n + m - 1) // m) * m


def critic_kernel(x_ref, w1_ref, b1_ref, w2_ref, b2_ref, w3_ref, b3_ref,
                  wq_ref, bq_ref, q_ref):
    # fc1: [x, a] @ W1 (action scale already folded into W1) -- bf16 in, f32 acc.
    h = jnp.dot(x_ref[...].astype(jnp.bfloat16), w1_ref[...],
                preferred_element_type=jnp.float32) + b1_ref[...]
    h = jnp.maximum(h, 0.0)
    # fc2
    h = jnp.dot(h.astype(jnp.bfloat16), w2_ref[...],
                preferred_element_type=jnp.float32) + b2_ref[...]
    h = jnp.maximum(h, 0.0)
    # fc3
    h = jnp.dot(h.astype(jnp.bfloat16), w3_ref[...],
                preferred_element_type=jnp.float32) + b3_ref[...]
    h = jnp.maximum(h, 0.0)
    # q_out: (TB,256)x(256,1) would light 1 of 128 MXU lanes; use VPU mul + lane
    # reduction on the otherwise-idle XLU instead.
    q_ref[...] = jnp.sum(h * wq_ref[...], axis=-1, keepdims=True) + bq_ref[...]


def init_params(key, obs_dim, goal_dim, action_dim, hidden=HIDDEN):
    """PyTorch nn.Linear-style init: U(-1/sqrt(fan_in), 1/sqrt(fan_in)), f32."""
    in1 = obs_dim + goal_dim + action_dim
    ks = jax.random.split(key, 8)

    def uni(k, shape, fan_in):
        bound = 1.0 / jnp.sqrt(jnp.float32(fan_in))
        return jax.random.uniform(k, shape, jnp.float32, -bound, bound)

    return {
        "w1": uni(ks[0], (in1, hidden), in1),
        "b1": uni(ks[1], (1, hidden), in1),
        "w2": uni(ks[2], (hidden, hidden), hidden),
        "b2": uni(ks[3], (1, hidden), hidden),
        "w3": uni(ks[4], (hidden, hidden), hidden),
        "b3": uni(ks[5], (1, hidden), hidden),
        "wq": uni(ks[6], (hidden, 1), hidden),
        "bq": uni(ks[7], (1, 1), hidden),
    }


def prepare_params(raw, max_action, action_dim):
    """One-time param prep for the kernel: fold 1/max_action into the action rows
    of W1, cast matmul weights to bf16 (f32 accumulation in-kernel), and lay out
    wq as a (1, hidden) row for the lane reduction."""
    w1 = raw["w1"]
    scale = jnp.concatenate(
        [jnp.ones((w1.shape[0] - action_dim, 1), jnp.float32),
         jnp.full((action_dim, 1), 1.0 / max_action, jnp.float32)], axis=0)
    w1_scaled = w1 * scale
    return {
        "w1": w1_scaled.astype(jnp.bfloat16),
        "b1": raw["b1"].astype(jnp.float32),
        "w2": raw["w2"].astype(jnp.bfloat16),
        "b2": raw["b2"].astype(jnp.float32),
        "w3": raw["w3"].astype(jnp.bfloat16),
        "b3": raw["b3"].astype(jnp.float32),
        "wq_row": raw["wq"].T.astype(jnp.float32),   # (1, hidden)
        "bq": raw["bq"].astype(jnp.float32),
    }


@functools.partial(jax.jit, static_argnames=("block_b",))
def critic_forward(x, actions, kparams, block_b=256):
    """x: (B, obs+goal), actions: (B, action) -> q: (B, 1).  Action scaling is
    already folded into kparams['w1']."""
    B = x.shape[0]
    xin = jnp.concatenate([x.astype(jnp.float32), actions.astype(jnp.float32)],
                          axis=1)
    in_feat = xin.shape[1]
    H = kparams["w1"].shape[1]

    # Batch tile: multiple of 8 (f32 sublane), capped at block_b; pad B if needed.
    tb = max(8, min(block_b, _round_up(B, 8)))
    bp = _round_up(B, tb)
    if bp != B:
        xin = jnp.pad(xin, ((0, bp - B), (0, 0)))

    param_list = [kparams["w1"], kparams["b1"],
                  kparams["w2"], kparams["b2"],
                  kparams["w3"], kparams["b3"],
                  kparams["wq_row"], kparams["bq"]]

    in_specs = [pl.BlockSpec((tb, in_feat), lambda i: (i, 0))]
    # Weights / biases: full-array blocks, constant index map -> VMEM-resident.
    in_specs += [pl.BlockSpec(p.shape, lambda i: (0, 0)) for p in param_list]
    out_spec = pl.BlockSpec((tb, 1), lambda i: (i, 0))

    flops = 2 * bp * (in_feat * H + 2 * H * H + H)
    bytes_accessed = int(xin.size * 4 + bp * 4 +
                         sum(p.size * p.dtype.itemsize for p in param_list))
    cost = pl.CostEstimate(flops=flops, transcendentals=0,
                           bytes_accessed=bytes_accessed)

    q = pl.pallas_call(
        critic_kernel,
        out_shape=jax.ShapeDtypeStruct((bp, 1), jnp.float32),
        grid=(bp // tb,),
        in_specs=in_specs,
        out_specs=out_spec,
        compiler_params=pltpu.CompilerParams(
            dimension_semantics=("parallel",)),
        cost_estimate=cost,
    )(xin, *param_list)
    return q[:B]


def critic_reference_kernel_math(x, actions, kparams):
    """Pure-JAX reference with the exact kernel math/dtypes (bf16 weights, f32 acc)."""
    xin = jnp.concatenate([x, actions], axis=1).astype(jnp.float32)
    h = jnp.maximum(jnp.dot(xin.astype(jnp.bfloat16), kparams["w1"],
                            preferred_element_type=jnp.float32) + kparams["b1"], 0.0)
    h = jnp.maximum(jnp.dot(h.astype(jnp.bfloat16), kparams["w2"],
                            preferred_element_type=jnp.float32) + kparams["b2"], 0.0)
    h = jnp.maximum(jnp.dot(h.astype(jnp.bfloat16), kparams["w3"],
                            preferred_element_type=jnp.float32) + kparams["b3"], 0.0)
    return jnp.sum(h * kparams["wq_row"], axis=-1, keepdims=True) + kparams["bq"]


def critic_reference_f32(x, actions, raw, max_action):
    """Full-precision reference matching the PyTorch module."""
    xin = jnp.concatenate([x, actions / max_action], axis=1)
    h = jax.nn.relu(xin @ raw["w1"] + raw["b1"])
    h = jax.nn.relu(h @ raw["w2"] + raw["b2"])
    h = jax.nn.relu(h @ raw["w3"] + raw["b3"])
    return h @ raw["wq"] + raw["bq"]


if __name__ == "__main__":
    # Small HER-style goal-conditioned env shapes.
    obs_dim, goal_dim, action_dim = 10, 3, 4
    max_action = 2.0
    batch = 8

    key = jax.random.PRNGKey(0)
    kx, ka, kp = jax.random.split(key, 3)
    x = jax.random.normal(kx, (batch, obs_dim + goal_dim), dtype=jnp.float32)
    actions = jax.random.uniform(ka, (batch, action_dim), jnp.float32,
                                 -max_action, max_action)

    raw = init_params(kp, obs_dim, goal_dim, action_dim)
    kparams = prepare_params(raw, max_action, action_dim)

    q = critic_forward(x, actions, kparams)
    q = jax.block_until_ready(q)
    assert q.shape == (batch, 1)

    # Tight check against a pure-JAX model with identical (bf16-weight) math.
    q_match = critic_reference_kernel_math(x, actions, kparams)
    assert jnp.allclose(q, q_match, atol=1e-3, rtol=1e-3), "mismatch vs matched-precision reference"

    # Loose check against the full-f32 PyTorch-equivalent reference (bf16 weight quantization).
    q_f32 = critic_reference_f32(x, actions, raw, max_action)
    assert jnp.allclose(q, q_f32, atol=5e-2, rtol=5e-2), "mismatch vs f32 reference"

    print("KERNEL_OK")
</pallas_src>

<mosaic_0001>
module attributes {stable_mosaic.version = 11 : i64} {
  func.func @critic_kernel(%arg0: i32, %arg1: memref<8x17xf32, #tpu.memory_space<vmem>>, %arg2: memref<17x256xbf16, #tpu.memory_space<vmem>>, %arg3: memref<1x256xf32, #tpu.memory_space<vmem>>, %arg4: memref<256x256xbf16, #tpu.memory_space<vmem>>, %arg5: memref<1x256xf32, #tpu.memory_space<vmem>>, %arg6: memref<256x256xbf16, #tpu.memory_space<vmem>>, %arg7: memref<1x256xf32, #tpu.memory_space<vmem>>, %arg8: memref<1x256xf32, #tpu.memory_space<vmem>>, %arg9: memref<1x1xf32, #tpu.memory_space<vmem>>, %arg10: memref<8x1xf32, #tpu.memory_space<vmem>>) attributes {dimension_semantics = [#tpu.dimension_semantics<parallel>], iteration_bounds = array<i64: 1>, scalar_prefetch = 0 : i64, scratch_operands = 0 : i64, tpu.core_type = #tpu.core_type<tc>, window_params = [{transform_indices = @transform_0, window_bounds = array<i64: 8, 17>}, {pipeline_mode = #tpu.pipeline_mode<synchronous>, transform_indices = @transform_1, window_bounds = array<i64: 17, 256>}, {pipeline_mode = #tpu.pipeline_mode<synchronous>, transform_indices = @transform_2, window_bounds = array<i64: 1, 256>}, {pipeline_mode = #tpu.pipeline_mode<synchronous>, transform_indices = @transform_3, window_bounds = array<i64: 256, 256>}, {pipeline_mode = #tpu.pipeline_mode<synchronous>, transform_indices = @transform_4, window_bounds = array<i64: 1, 256>}, {pipeline_mode = #tpu.pipeline_mode<synchronous>, transform_indices = @transform_5, window_bounds = array<i64: 256, 256>}, {pipeline_mode = #tpu.pipeline_mode<synchronous>, transform_indices = @transform_6, window_bounds = array<i64: 1, 256>}, {pipeline_mode = #tpu.pipeline_mode<synchronous>, transform_indices = @transform_7, window_bounds = array<i64: 1, 256>}, {pipeline_mode = #tpu.pipeline_mode<synchronous>, transform_indices = @transform_8, window_bounds = array<i64: 1, 1>}, {transform_indices = @transform_9, window_bounds = array<i64: 8, 1>}]} {
    %c0 = arith.constant 0 : index
    %c0_0 = arith.constant 0 : index
    %0 = vector.load %arg1[%c0, %c0_0] : memref<8x17xf32, #tpu.memory_space<vmem>>, vector<8x17xf32>
    %1 = arith.truncf %0 : vector<8x17xf32> to vector<8x17xbf16>
    %c0_1 = arith.constant 0 : index
    %c0_2 = arith.constant 0 : index
    %2 = vector.load %arg2[%c0_1, %c0_2] : memref<17x256xbf16, #tpu.memory_space<vmem>>, vector<17x256xbf16>
    %cst = arith.constant dense<0.000000e+00> : vector<8x256xf32>
    %3 = tpu.matmul %1, %2, %cst {dimension_numbers = #tpu.dot_dimension_numbers<[1], [0], [0], [1], [0, 0, 1, 1], [], []>} : vector<8x17xbf16>, vector<17x256xbf16>, vector<8x256xf32> -> vector<8x256xf32>
    %c0_3 = arith.constant 0 : index
    %c0_4 = arith.constant 0 : index
    %4 = vector.load %arg3[%c0_3, %c0_4] : memref<1x256xf32, #tpu.memory_space<vmem>>, vector<1x256xf32>
    %5 = vector.broadcast %4 : vector<1x256xf32> to vector<8x256xf32>
    %6 = arith.addf %3, %5 : vector<8x256xf32>
    %cst_5 = arith.constant 0.000000e+00 : f32
    %7 = vector.broadcast %cst_5 : f32 to vector<8x256xf32>
    %8 = arith.maximumf %6, %7 : vector<8x256xf32>
    %9 = arith.truncf %8 : vector<8x256xf32> to vector<8x256xbf16>
    %c0_6 = arith.constant 0 : index
    %c0_7 = arith.constant 0 : index
    %10 = vector.load %arg4[%c0_6, %c0_7] : memref<256x256xbf16, #tpu.memory_space<vmem>>, vector<256x256xbf16>
    %cst_8 = arith.constant dense<0.000000e+00> : vector<8x256xf32>
    %11 = tpu.matmul %9, %10, %cst_8 {dimension_numbers = #tpu.dot_dimension_numbers<[1], [0], [0], [1], [0, 0, 1, 1], [], []>} : vector<8x256xbf16>, vector<256x256xbf16>, vector<8x256xf32> -> vector<8x256xf32>
    %c0_9 = arith.constant 0 : index
    %c0_10 = arith.constant 0 : index
    %12 = vector.load %arg5[%c0_9, %c0_10] : memref<1x256xf32, #tpu.memory_space<vmem>>, vector<1x256xf32>
    %13 = vector.broadcast %12 : vector<1x256xf32> to vector<8x256xf32>
    %14 = arith.addf %11, %13 : vector<8x256xf32>
    %cst_11 = arith.constant 0.000000e+00 : f32
    %15 = vector.broadcast %cst_11 : f32 to vector<8x256xf32>
    %16 = arith.maximumf %14, %15 : vector<8x256xf32>
    %17 = arith.truncf %16 : vector<8x256xf32> to vector<8x256xbf16>
    %c0_12 = arith.constant 0 : index
    %c0_13 = arith.constant 0 : index
    %18 = vector.load %arg6[%c0_12, %c0_13] : memref<256x256xbf16, #tpu.memory_space<vmem>>, vector<256x256xbf16>
    %cst_14 = arith.constant dense<0.000000e+00> : vector<8x256xf32>
    %19 = tpu.matmul %17, %18, %cst_14 {dimension_numbers = #tpu.dot_dimension_numbers<[1], [0], [0], [1], [0, 0, 1, 1], [], []>} : vector<8x256xbf16>, vector<256x256xbf16>, vector<8x256xf32> -> vector<8x256xf32>
    %c0_15 = arith.constant 0 : index
    %c0_16 = arith.constant 0 : index
    %20 = vector.load %arg7[%c0_15, %c0_16] : memref<1x256xf32, #tpu.memory_space<vmem>>, vector<1x256xf32>
    %21 = vector.broadcast %20 : vector<1x256xf32> to vector<8x256xf32>
    %22 = arith.addf %19, %21 : vector<8x256xf32>
    %cst_17 = arith.constant 0.000000e+00 : f32
    %23 = vector.broadcast %cst_17 : f32 to vector<8x256xf32>
    %24 = arith.maximumf %22, %23 : vector<8x256xf32>
    %c0_18 = arith.constant 0 : index
    %c0_19 = arith.constant 0 : index
    %25 = vector.load %arg8[%c0_18, %c0_19] : memref<1x256xf32, #tpu.memory_space<vmem>>, vector<1x256xf32>
    %26 = vector.broadcast %25 : vector<1x256xf32> to vector<8x256xf32>
    %27 = arith.mulf %24, %26 : vector<8x256xf32>
    %cst_20 = arith.constant dense<0.000000e+00> : vector<8xf32>
    %28 = vector.multi_reduction <add>, %27, %cst_20 [1] : vector<8x256xf32> to vector<8xf32>
    %29 = vector.shape_cast %28 : vector<8xf32> to vector<8x1xf32>
    %c0_21 = arith.constant 0 : index
    %c0_22 = arith.constant 0 : index
    %30 = vector.load %arg9[%c0_21, %c0_22] : memref<1x1xf32, #tpu.memory_space<vmem>>, vector<1x1xf32>
    %31 = vector.broadcast %30 : vector<1x1xf32> to vector<8x1xf32>
    %32 = arith.addf %29, %31 : vector<8x1xf32>
    %c0_23 = arith.constant 0 : index
    %c0_24 = arith.constant 0 : index
    %33 = vector.load %arg10[%c0_23, %c0_24] : memref<8x1xf32, #tpu.memory_space<vmem>>, vector<8x1xf32>
    tpu.vector_store %arg10[%c0_23, %c0_24], %32 {strides = array<i32>} : memref<8x1xf32, #tpu.memory_space<vmem>>, vector<8x1xf32>,
    return
  }
  func.func @transform_0(%arg0: i32) -> (i32, i32) {
    %c0_i32 = arith.constant 0 : i32
    %c0_i32_0 = arith.constant 0 : i32
    return %arg0, %c0_i32 : i32, i32
  }
  func.func @transform_1(%arg0: i32) -> (i32, i32) {
    %c0_i32 = arith.constant 0 : i32
    %c0_i32_0 = arith.constant 0 : i32
    %c0_i32_1 = arith.constant 0 : i32
    return %c0_i32, %c0_i32_0 : i32, i32
  }
  func.func @transform_2(%arg0: i32) -> (i32, i32) {
    %c0_i32 = arith.constant 0 : i32
    %c0_i32_0 = arith.constant 0 : i32
    %c0_i32_1 = arith.constant 0 : i32
    return %c0_i32, %c0_i32_0 : i32, i32
  }
  func.func @transform_3(%arg0: i32) -> (i32, i32) {
    %c0_i32 = arith.constant 0 : i32
    %c0_i32_0 = arith.constant 0 : i32
    %c0_i32_1 = arith.constant 0 : i32
    return %c0_i32, %c0_i32_0 : i32, i32
  }
  func.func @transform_4(%arg0: i32) -> (i32, i32) {
    %c0_i32 = arith.constant 0 : i32
    %c0_i32_0 = arith.constant 0 : i32
    %c0_i32_1 = arith.constant 0 : i32
    return %c0_i32, %c0_i32_0 : i32, i32
  }
  func.func @transform_5(%arg0: i32) -> (i32, i32) {
    %c0_i32 = arith.constant 0 : i32
    %c0_i32_0 = arith.constant 0 : i32
    %c0_i32_1 = arith.constant 0 : i32
    return %c0_i32, %c0_i32_0 : i32, i32
  }
  func.func @transform_6(%arg0: i32) -> (i32, i32) {
    %c0_i32 = arith.constant 0 : i32
    %c0_i32_0 = arith.constant 0 : i32
    %c0_i32_1 = arith.constant 0 : i32
    return %c0_i32, %c0_i32_0 : i32, i32
  }
  func.func @transform_7(%arg0: i32) -> (i32, i32) {
    %c0_i32 = arith.constant 0 : i32
    %c0_i32_0 = arith.constant 0 : i32
    %c0_i32_1 = arith.constant 0 : i32
    return %c0_i32, %c0_i32_0 : i32, i32
  }
  func.func @transform_8(%arg0: i32) -> (i32, i32) {
    %c0_i32 = arith.constant 0 : i32
    %c0_i32_0 = arith.constant 0 : i32
    %c0_i32_1 = arith.constant 0 : i32
    return %c0_i32, %c0_i32_0 : i32, i32
  }
  func.func @transform_9(%arg0: i32) -> (i32, i32) {
    %c0_i32 = arith.constant 0 : i32
    %c0_i32_0 = arith.constant 0 : i32
    return %arg0, %c0_i32 : i32, i32
  }
}

</mosaic_0001>

<llo_original>
// kernel: critic_forward.1
$region0: #{critic_forward.1}
  #allocation0 [shape = 'u32[]', space=smem, size = 0x4, offset = 0x4, fixed_abs, tag = 'smem constant byte address 0x4 - core index']
  #allocation1 [shape = 'u32[144,128]{1,0:T(1,128)}', space=vmem, size = 0x12000, scoped, tag = 'internal scratch']
  #allocation2 [shape = 'f32[1,1]{1,0:T(1,128)S(1)}', space=vmem, size = 0x200, scoped, tag = 'scoped memory for critic_forward.1']
  %s0 = inlined_call_operand.vmem [shape: f32[8,17], index: 0, kind: input, shape index: {}]
  %s1 = inlined_call_operand.vmem [shape: bf16[17,256], index: 1, kind: input, shape index: {}]
  %s2 = inlined_call_operand.vmem [shape: f32[1,256], index: 2, kind: input, shape index: {}]
  %s3 = inlined_call_operand.hbm [shape: bf16[256,256], index: 3, kind: input, shape index: {}]
  %s4 = inlined_call_operand.vmem [shape: f32[1,256], index: 4, kind: input, shape index: {}]
  %s5 = inlined_call_operand.hbm [shape: bf16[256,256], index: 5, kind: input, shape index: {}]
  %s6 = inlined_call_operand.vmem [shape: f32[1,256], index: 6, kind: input, shape index: {}]
  %s7 = inlined_call_operand.vmem [shape: f32[1,256], index: 7, kind: input, shape index: {}]
  %s8 = inlined_call_operand.<no memory space> [shape: f32[1,1], index: 8, kind: input, shape index: {}]
  %s9 = inlined_call_operand.vmem [shape: f32[8,1], index: 9, kind: output, shape index: {}]
  %s10 = sld [smem:[#allocation0]]
  $region54: #{critic_forward.1} parent=0
    _
  %s12 = ssub.s32 1, %s10
  %s13 = scalar_select 0, %s12, %s10
  %v14 = vstv %s8
  %15 = vst [vmem:[#allocation2] sm:$0x1] %v14
  $region1: #{critic_forward.1} parent=0
    #allocation3 [shape = 'u8[131072]{0}', space=vmem, size = 0x20000, scoped, tag = 'input window, operand 3, single buffered']
    #allocation4 [shape = 's32[1]{0}', space=sflag, size = 0x4, scoped, tag = 'scoped memory for critic_forward.1']
    #allocation5 [shape = 'u8[131072]{0}', space=vmem, size = 0x20000, scoped, tag = 'input window, operand 5, single buffered']
    #allocation6 [shape = 's32[1]{0}', space=sflag, size = 0x4, scoped, tag = 'scoped memory for critic_forward.1']
    %16 = vsyncpa [#allocation4], 0
    %17 = vsyncpa [#allocation6], 0
    // Predicated region
    $region2: #{critic_forward.1} parent=1 // pred_check
      _
    $region3: #{critic_forward.1} parent=1 // pred_check_branch
      %19 = sbr.rel (0) target = $region5
    $region4: #{critic_forward.1} parent=1 // pred_region
      _
    $region5: #{critic_forward.1} parent=1 // pred_fallthru
      _
    // Predicated region
    $region6: #{critic_forward.1} parent=1 // pred_check
      _
    $region7: #{critic_forward.1} parent=1 // pred_check_branch
      %21 = sbr.rel (0) target = $region9
    $region8: #{critic_forward.1} parent=1 // pred_region
      _
    $region9: #{critic_forward.1} parent=1 // pred_fallthru
      _
    // Predicated region
    $region10: #{critic_forward.1} parent=1 // pred_check
      _
    $region11: #{critic_forward.1} parent=1 // pred_check_branch
      %23 = sbr.rel (0) target = $region13
    $region12: #{critic_forward.1} parent=1 // pred_region
      _
    $region13: #{critic_forward.1} parent=1 // pred_fallthru
      _
    // Predicated region
    $region14: #{critic_forward.1} parent=1 // pred_check
      _
    $region15: #{critic_forward.1} parent=1 // pred_check_branch
      %25 = sbr.rel (0) target = $region17
    $region16: #{critic_forward.1} parent=1 // pred_region
      %s27 = ssub.s32 4096, 4096
      %28 = vsyncadd [#allocation4], %s27
      %s29 = sshll.u32 [#allocation3], 4
      %s30 = int_to_ptr.vmem [resolvable:$true] %s29
      %35 = dma.hbm_to_vmem [thread:$0]  %s3, 4096, %s30, [#allocation4], 128, 128, 8
    $region17: #{critic_forward.1} parent=1 // pred_fallthru
      _
    // Predicated region
    $region18: #{critic_forward.1} parent=1 // pred_check
      _
    $region19: #{critic_forward.1} parent=1 // pred_check_branch
      %37 = sbr.rel (0) target = $region21
    $region20: #{critic_forward.1} parent=1 // pred_region
      _
    $region21: #{critic_forward.1} parent=1 // pred_fallthru
      _
    // Predicated region
    $region22: #{critic_forward.1} parent=1 // pred_check
      _
    $region23: #{critic_forward.1} parent=1 // pred_check_branch
      %39 = sbr.rel (0) target = $region25
    $region24: #{critic_forward.1} parent=1 // pred_region
      %s41 = ssub.s32 4096, 4096
      %42 = vsyncadd [#allocation6], %s41
      %s43 = sshll.u32 [#allocation5], 4
      %s44 = int_to_ptr.vmem [resolvable:$true] %s43
      %49 = dma.hbm_to_vmem [thread:$0]  %s5, 4096, %s44, [#allocation6], 128, 128, 8
    $region25: #{critic_forward.1} parent=1 // pred_fallthru
      _
    // Predicated region
    $region26: #{critic_forward.1} parent=1 // pred_check
      _
    $region27: #{critic_forward.1} parent=1 // pred_check_branch
      %51 = sbr.rel (0) target = $region29
    $region28: #{critic_forward.1} parent=1 // pred_region
      _
    $region29: #{critic_forward.1} parent=1 // pred_fallthru
      _
    // Predicated region
    $region30: #{critic_forward.1} parent=1 // pred_check
      _
    $region31: #{critic_forward.1} parent=1 // pred_check_branch
      %53 = sbr.rel (0) target = $region33
    $region32: #{critic_forward.1} parent=1 // pred_region
      _
    $region33: #{critic_forward.1} parent=1 // pred_fallthru
      _
    // Predicated region
    $region34: #{critic_forward.1} parent=1 // pred_check
      _
    $region35: #{critic_forward.1} parent=1 // pred_check_branch
      %55 = sbr.rel (0) target = $region37
    $region36: #{critic_forward.1} parent=1 // pred_region
      _
    $region37: #{critic_forward.1} parent=1 // pred_fallthru
      _
    // Predicated region
    $region38: #{critic_forward.1} parent=1 // pred_check
      _
    $region39: #{critic_forward.1} parent=1 // pred_check_branch
      %57 = sbr.rel (0) target = $region41
    $region40: #{critic_forward.1} parent=1 // pred_region
      %58 = dma.done [#allocation4], 4096
    $region41: #{critic_forward.1} parent=1 // pred_fallthru
      _
    // Predicated region
    $region42: #{critic_forward.1} parent=1 // pred_check
      _
    $region43: #{critic_forward.1} parent=1 // pred_check_branch
      %60 = sbr.rel (0) target = $region45
    $region44: #{critic_forward.1} parent=1 // pred_region
      %61 = dma.done [#allocation6], 4096
    $region45: #{critic_forward.1} parent=1 // pred_fallthru
      _
    %v63 = vld [vmem:[%s0] sm:$0xff]
    %v64 = vpack.c.bf16 %v63, %v63
    %v65 = vld [vmem:[%s1] sm:$0xff]
    %v66 = vld [vmem:[%s1 + $0x8] sm:$0xff]
    %v67 = vld [vmem:[%s1 + $0x10] sm:$0x11]
    %v68 = vld [vmem:[%s2] sm:$0x3]
    %v70 = vlaneseq
    %v71 = vshrl.u32 %v70, 7
    %v72 = vsub.s32 0, %v71
    %v73 = vrot.slane %v68, %v72
    %v74 = vlaneseq
    %v75 = vshrl.u32 %v74, 7
    %v76 = vsub.s32 1, %v75
    %v77 = vrot.slane %v68, %v76
    %v83 = vunpack.c.l.b16 %v65
    %v84 = vunpack.c.h.b16 %v65
    %v85 = vunpack.c.l.b16 %v66
    %v86 = vunpack.c.h.b16 %v66
    %v87 = vunpack.c.l.b16 %v67
    %v88 = vunpack.c.h.b16 %v67
    %v89 = vpack.c.b16 %v85, %v83
    %v90 = vpack.c.b16 %v86, %v84
    %v91 = vpack.c.b16 %v87, %v87
    %v92 = vpack.c.b16 %v88, %v88
    %vm95 = vcmask 138240
    %v97 = vsel %vm95, %v64, 0
    %vm99 = vcmask 1040384
    %v100 = vsel 0, 4294967295, 65535
    %v101 = vsel %vm99, %v100, 0
    %v103 = vand.u32 %v91, %v101
    %v106 = vand.u32 %v92, %v101
    %108 = vmatprep.subr.bf16.mxu0 %v90
    %109 = vmatpush1.bf16.msra.mxu0 %v89
    %110 = vmatprep.subr.bf16.mxu0 %v106
    %111 = vmatpush1.bf16.msra.mxu0 %v103
    %112 = vmatprep.subr.bf16.mxu0 0
    %113 = vmatpush1.bf16.msra.mxu0 0
    %114 = vmatprep.subr.bf16.mxu0 0
    %115 = vmatpush1.bf16.msra.mxu0 0
    %116 = vmatprep.subr.bf16.mxu0 0
    %117 = vmatpush1.bf16.msra.mxu0 0
    %118 = vmatprep.subr.bf16.mxu0 0
    %119 = vmatpush1.bf16.msra.mxu0 0
    %120 = vmatprep.subr.bf16.mxu0 0
    %121 = vmatpush1.bf16.msra.mxu0 0
    %122 = vmatprep.subr.bf16.mxu0 0
    %123 = vmatpush1.bf16.msra.mxu0 0
    %124 = vmatprep.subr.bf16.mxu0 0
    %125 = vmatpush1.bf16.msra.mxu0 0
    %126 = vmatprep.subr.bf16.mxu0 0
    %127 = vmatpush1.bf16.msra.mxu0 0
    %128 = vmatprep.subr.bf16.mxu0 0
    %129 = vmatpush1.bf16.msra.mxu0 0
    %130 = vmatprep.subr.bf16.mxu0 0
    %131 = vmatpush1.bf16.msra.mxu0 0
    %132 = vmatprep.subr.bf16.mxu0 0
    %133 = vmatpush1.bf16.msra.mxu0 0
    %134 = vmatprep.subr.bf16.mxu0 0
    %135 = vmatpush1.bf16.msra.mxu0 0
    %136 = vmatprep.subr.bf16.mxu0 0
    %137 = vmatpush1.bf16.msra.mxu0 0
    %138 = vmatprep.subr.bf16.mxu0 0
    %139 = vmatpush1.bf16.msra.mxu0 0
    %140 = vmatprep.mubr.bf16.mxu0 0
    %141 = vmatmul.mubr.bf16.gmra.mrb[0].mxu0 %v97
    %v142 = vpop.f32.mrb[0].mxu0
    %v143 = vadd.f32 %v73, %v142
    %v144 = vpop.f32.mrb[0].mxu0
    %v145 = vadd.f32 %v77, %v144
    %v146 = vpop.f32.mrb[0].mxu0
    %v147 = vpop.f32.mrb[0].mxu0
    %148 = vdwg.mxu0
    %v149 = vmax.f32 %v143, 0.0
    %v150 = vmax.f32 %v145, 0.0
    %v151 = vpack.c.bf16 %v149, %v149
    %v152 = vpack.c.bf16 %v150, %v150
    %v153 = vld [vmem:[#allocation3] sm:$0xff]
    %v154 = vld [vmem:[#allocation3 + $0x8] sm:$0xff]
    %v155 = vld [vmem:[#allocation3 + $0x10] sm:$0xff]
    %v156 = vld [vmem:[#allocation3 + $0x18] sm:$0xff]
    %v157 = vld [vmem:[#allocation3 + $0x20] sm:$0xff]
    %v158 = vld [vmem:[#allocation3 + $0x28] sm:$0xff]
    %v159 = vld [vmem:[#allocation3 + $0x30] sm:$0xff]
    %v160 = vld [vmem:[#allocation3 + $0x38] sm:$0xff]
    %v161 = vld [vmem:[#allocation3 + $0x40] sm:$0xff]
    %v162 = vld [vmem:[#allocation3 + $0x48] sm:$0xff]
    %v163 = vld [vmem:[#allocation3 + $0x50] sm:$0xff]
    %v164 = vld [vmem:[#allocation3 + $0x58] sm:$0xff]
    %v165 = vld [vmem:[#allocation3 + $0x60] sm:$0xff]
    %v166 = vld [vmem:[#allocation3 + $0x68] sm:$0xff]
    %v167 = vld [vmem:[#allocation3 + $0x70] sm:$0xff]
    %v168 = vld [vmem:[#allocation3 + $0x78] sm:$0xff]
    %v169 = vld [vmem:[#allocation3 + $0x80] sm:$0xff]
    %v170 = vld [vmem:[#allocation3 + $0x88] sm:$0xff]
    %v171 = vld [vmem:[#allocation3 + $0x90] sm:$0xff]
    %v172 = vld [vmem:[#allocation3 + $0x98] sm:$0xff]
    %v173 = vld [vmem:[#allocation3 + $0xa0] sm:$0xff]
    %v174 = vld [vmem:[#allocation3 + $0xa8] sm:$0xff]
    %v175 = vld [vmem:[#allocation3 + $0xb0] sm:$0xff]
    %v176 = vld [vmem:[#allocation3 + $0xb8] sm:$0xff]
    %v177 = vld [vmem:[#allocation3 + $0xc0] sm:$0xff]
    %v178 = vld [vmem:[#allocation3 + $0xc8] sm:$0xff]
    %v179 = vld [vmem:[#allocation3 + $0xd0] sm:$0xff]
    %v180 = vld [vmem:[#allocation3 + $0xd8] sm:$0xff]
    %v181 = vld [vmem:[#allocation3 + $0xe0] sm:$0xff]
    %v182 = vld [vmem:[#allocation3 + $0xe8] sm:$0xff]
    %v183 = vld [vmem:[#allocation3 + $0xf0] sm:$0xff]
    %v184 = vld [vmem:[#allocation3 + $0xf8] sm:$0xff]
    %v185 = vld [vmem:[%s4] sm:$0x3]
    %v187 = vlaneseq
    %v188 = vshrl.u32 %v187, 7
    %v189 = vsub.s32 0, %v188
    %v190 = vrot.slane %v185, %v189
    %v191 = vlaneseq
    %v192 = vshrl.u32 %v191, 7
    %v193 = vsub.s32 1, %v192
    %v194 = vrot.slane %v185, %v193
    %v229 = vunpack.c.l.b16 %v153
    %v230 = vunpack.c.h.b16 %v153
    %v231 = vunpack.c.l.b16 %v154
    %v232 = vunpack.c.h.b16 %v154
    %v233 = vunpack.c.l.b16 %v155
    %v234 = vunpack.c.h.b16 %v155
    %v235 = vunpack.c.l.b16 %v156
    %v236 = vunpack.c.h.b16 %v156
    %v237 = vunpack.c.l.b16 %v157
    %v238 = vunpack.c.h.b16 %v157
    %v239 = vunpack.c.l.b16 %v158
    %v240 = vunpack.c.h.b16 %v158
    %v241 = vunpack.c.l.b16 %v159
    %v242 = vunpack.c.h.b16 %v159
    %v243 = vunpack.c.l.b16 %v160
    %v244 = vunpack.c.h.b16 %v160
    %v245 = vunpack.c.l.b16 %v161
    %v246 = vunpack.c.h.b16 %v161
    %v247 = vunpack.c.l.b16 %v162
    %v248 = vunpack.c.h.b16 %v162
    %v249 = vunpack.c.l.b16 %v163
    %v250 = vunpack.c.h.b16 %v163
    %v251 = vunpack.c.l.b16 %v164
    %v252 = vunpack.c.h.b16 %v164
    %v253 = vunpack.c.l.b16 %v165
    %v254 = vunpack.c.h.b16 %v165
    %v255 = vunpack.c.l.b16 %v166
    %v256 = vunpack.c.h.b16 %v166
    %v257 = vunpack.c.l.b16 %v167
    %v258 = vunpack.c.h.b16 %v167
    %v259 = vunpack.c.l.b16 %v168
    %v260 = vunpack.c.h.b16 %v168
    %v261 = vunpack.c.l.b16 %v169
    %v262 = vunpack.c.h.b16 %v169
    %v263 = vunpack.c.l.b16 %v170
    %v264 = vunpack.c.h.b16 %v170
    %v265 = vunpack.c.l.b16 %v171
    %v266 = vunpack.c.h.b16 %v171
    %v267 = vunpack.c.l.b16 %v172
    %v268 = vunpack.c.h.b16 %v172
    %v269 = vunpack.c.l.b16 %v173
    %v270 = vunpack.c.h.b16 %v173
    %v271 = vunpack.c.l.b16 %v174
    %v272 = vunpack.c.h.b16 %v174
    %v273 = vunpack.c.l.b16 %v175
    %v274 = vunpack.c.h.b16 %v175
    %v275 = vunpack.c.l.b16 %v176
    %v276 = vunpack.c.h.b16 %v176
    %v277 = vunpack.c.l.b16 %v177
    %v278 = vunpack.c.h.b16 %v177
    %v279 = vunpack.c.l.b16 %v178
    %v280 = vunpack.c.h.b16 %v178
    %v281 = vunpack.c.l.b16 %v179
    %v282 = vunpack.c.h.b16 %v179
    %v283 = vunpack.c.l.b16 %v180
    %v284 = vunpack.c.h.b16 %v180
    %v285 = vunpack.c.l.b16 %v181
    %v286 = vunpack.c.h.b16 %v181
    %v287 = vunpack.c.l.b16 %v182
    %v288 = vunpack.c.h.b16 %v182
    %v289 = vunpack.c.l.b16 %v183
    %v290 = vunpack.c.h.b16 %v183
    %v291 = vunpack.c.l.b16 %v184
    %v292 = vunpack.c.h.b16 %v184
    %v293 = vpack.c.b16 %v231, %v229
    %v294 = vpack.c.b16 %v232, %v230
    %v295 = vpack.c.b16 %v235, %v233
    %v296 = vpack.c.b16 %v236, %v234
    %v297 = vpack.c.b16 %v239, %v237
    %v298 = vpack.c.b16 %v240, %v238
    %v299 = vpack.c.b16 %v243, %v241
    %v300 = vpack.c.b16 %v244, %v242
    %v301 = vpack.c.b16 %v247, %v245
    %v302 = vpack.c.b16 %v248, %v246
    %v303 = vpack.c.b16 %v251, %v249
    %v304 = vpack.c.b16 %v252, %v250
    %v305 = vpack.c.b16 %v255, %v253
    %v306 = vpack.c.b16 %v256, %v254
    %v307 = vpack.c.b16 %v259, %v257
    %v308 = vpack.c.b16 %v260, %v258
    %v309 = vpack.c.b16 %v263, %v261
    %v310 = vpack.c.b16 %v264, %v262
    %v311 = vpack.c.b16 %v267, %v265
    %v312 = vpack.c.b16 %v268, %v266
    %v313 = vpack.c.b16 %v271, %v269
    %v314 = vpack.c.b16 %v272, %v270
    %v315 = vpack.c.b16 %v275, %v273
    %v316 = vpack.c.b16 %v276, %v274
    %v317 = vpack.c.b16 %v279, %v277
    %v318 = vpack.c.b16 %v280, %v278
    %v319 = vpack.c.b16 %v283, %v281
    %v320 = vpack.c.b16 %v284, %v282
    %v321 = vpack.c.b16 %v287, %v285
    %v322 = vpack.c.b16 %v288, %v286
    %v323 = vpack.c.b16 %v291, %v289
    %v324 = vpack.c.b16 %v292, %v290
    %357 = vmatprep.subr.bf16.mxu0 %v294
    %358 = vmatpush1.bf16.msra.mxu0 %v293
    %359 = vmatprep.subr.bf16.mxu0 %v296
    %360 = vmatpush1.bf16.msra.mxu0 %v295
    %361 = vmatprep.subr.bf16.mxu0 %v298
    %362 = vmatpush1.bf16.msra.mxu0 %v297
    %363 = vmatprep.subr.bf16.mxu0 %v300
    %364 = vmatpush1.bf16.msra.mxu0 %v299
    %365 = vmatprep.subr.bf16.mxu0 %v302
    %366 = vmatpush1.bf16.msra.mxu0 %v301
    %367 = vmatprep.subr.bf16.mxu0 %v304
    %368 = vmatpush1.bf16.msra.mxu0 %v303
    %369 = vmatprep.subr.bf16.mxu0 %v306
    %370 = vmatpush1.bf16.msra.mxu0 %v305
    %371 = vmatprep.subr.bf16.mxu0 %v308
    %372 = vmatpush1.bf16.msra.mxu0 %v307
    %373 = vmatprep.subr.bf16.mxu0 %v310
    %374 = vmatpush1.bf16.msra.mxu0 %v309
    %375 = vmatprep.subr.bf16.mxu0 %v312
    %376 = vmatpush1.bf16.msra.mxu0 %v311
    %377 = vmatprep.subr.bf16.mxu0 %v314
    %378 = vmatpush1.bf16.msra.mxu0 %v313
    %379 = vmatprep.subr.bf16.mxu0 %v316
    %380 = vmatpush1.bf16.msra.mxu0 %v315
    %381 = vmatprep.subr.bf16.mxu0 %v318
    %382 = vmatpush1.bf16.msra.mxu0 %v317
    %383 = vmatprep.subr.bf16.mxu0 %v320
    %384 = vmatpush1.bf16.msra.mxu0 %v319
    %385 = vmatprep.subr.bf16.mxu0 %v322
    %386 = vmatpush1.bf16.msra.mxu0 %v321
    %387 = vmatprep.subr.bf16.mxu0 %v324
    %388 = vmatpush1.bf16.msra.mxu0 %v323
    %389 = vmatprep.mubr.bf16.mxu0 %v152
    %390 = vmatmul.mubr.bf16.gmra.mrb[0].mxu0 %v151
    %v391 = vpop.f32.mrb[0].mxu0
    %v392 = vadd.f32 %v190, %v391
    %v393 = vpop.f32.mrb[0].mxu0
    %v394 = vadd.f32 %v194, %v393
    %v395 = vpop.f32.mrb[0].mxu0
    %v396 = vpop.f32.mrb[0].mxu0
    %397 = vdwg.mxu0
    %v398 = vmax.f32 %v392, 0.0
    %v399 = vmax.f32 %v394, 0.0
    %v400 = vpack.c.bf16 %v398, %v398
    %v401 = vpack.c.bf16 %v399, %v399
    %v402 = vld [vmem:[#allocation5] sm:$0xff]
    %v403 = vld [vmem:[#allocation5 + $0x8] sm:$0xff]
    %v404 = vld [vmem:[#allocation5 + $0x10] sm:$0xff]
    %v405 = vld [vmem:[#allocation5 + $0x18] sm:$0xff]
    %v406 = vld [vmem:[#allocation5 + $0x20] sm:$0xff]
    %v407 = vld [vmem:[#allocation5 + $0x28] sm:$0xff]
    %v408 = vld [vmem:[#allocation5 + $0x30] sm:$0xff]
    %v409 = vld [vmem:[#allocation5 + $0x38] sm:$0xff]
    %v410 = vld [vmem:[#allocation5 + $0x40] sm:$0xff]
    %v411 = vld [vmem:[#allocation5 + $0x48] sm:$0xff]
    %v412 = vld [vmem:[#allocation5 + $0x50] sm:$0xff]
    %v413 = vld [vmem:[#allocation5 + $0x58] sm:$0xff]
    %v414 = vld [vmem:[#allocation5 + $0x60] sm:$0xff]
    %v415 = vld [vmem:[#allocation5 + $0x68] sm:$0xff]
    %v416 = vld [vmem:[#allocation5 + $0x70] sm:$0xff]
    %v417 = vld [vmem:[#allocation5 + $0x78] sm:$0xff]
    %v418 = vld [vmem:[#allocation5 + $0x80] sm:$0xff]
    %v419 = vld [vmem:[#allocation5 + $0x88] sm:$0xff]
    %v420 = vld [vmem:[#allocation5 + $0x90] sm:$0xff]
    %v421 = vld [vmem:[#allocation5 + $0x98] sm:$0xff]
    %v422 = vld [vmem:[#allocation5 + $0xa0] sm:$0xff]
    %v423 = vld [vmem:[#allocation5 + $0xa8] sm:$0xff]
    %v424 = vld [vmem:[#allocation5 + $0xb0] sm:$0xff]
    %v425 = vld [vmem:[#allocation5 + $0xb8] sm:$0xff]
    %v426 = vld [vmem:[#allocation5 + $0xc0] sm:$0xff]
    %v427 = vld [vmem:[#allocation5 + $0xc8] sm:$0xff]
    %v428 = vld [vmem:[#allocation5 + $0xd0] sm:$0xff]
    %v429 = vld [vmem:[#allocation5 + $0xd8] sm:$0xff]
    %v430 = vld [vmem:[#allocation5 + $0xe0] sm:$0xff]
    %v431 = vld [vmem:[#allocation5 + $0xe8] sm:$0xff]
    %v432 = vld [vmem:[#allocation5 + $0xf0] sm:$0xff]
    %v433 = vld [vmem:[#allocation5 + $0xf8] sm:$0xff]
    %v434 = vld [vmem:[%s6] sm:$0x3]
    %v436 = vlaneseq
    %v437 = vshrl.u32 %v436, 7
    %v438 = vsub.s32 0, %v437
    %v439 = vrot.slane %v434, %v438
    %v440 = vlaneseq
    %v441 = vshrl.u32 %v440, 7
    %v442 = vsub.s32 1, %v441
    %v443 = vrot.slane %v434, %v442
    %v478 = vunpack.c.l.b16 %v402
    %v479 = vunpack.c.h.b16 %v402
    %v480 = vunpack.c.l.b16 %v403
    %v481 = vunpack.c.h.b16 %v403
    %v482 = vunpack.c.l.b16 %v404
    %v483 = vunpack.c.h.b16 %v404
    %v484 = vunpack.c.l.b16 %v405
    %v485 = vunpack.c.h.b16 %v405
    %v486 = vunpack.c.l.b16 %v406
    %v487 = vunpack.c.h.b16 %v406
    %v488 = vunpack.c.l.b16 %v407
    %v489 = vunpack.c.h.b16 %v407
    %v490 = vunpack.c.l.b16 %v408
    %v491 = vunpack.c.h.b16 %v408
    %v492 = vunpack.c.l.b16 %v409
    %v493 = vunpack.c.h.b16 %v409
    %v494 = vunpack.c.l.b16 %v410
    %v495 = vunpack.c.h.b16 %v410
    %v496 = vunpack.c.l.b16 %v411
    %v497 = vunpack.c.h.b16 %v411
    %v498 = vunpack.c.l.b16 %v412
    %v499 = vunpack.c.h.b16 %v412
    %v500 = vunpack.c.l.b16 %v413
    %v501 = vunpack.c.h.b16 %v413
    %v502 = vunpack.c.l.b16 %v414
    %v503 = vunpack.c.h.b16 %v414
    %v504 = vunpack.c.l.b16 %v415
    %v505 = vunpack.c.h.b16 %v415
    %v506 = vunpack.c.l.b16 %v416
    %v507 = vunpack.c.h.b16 %v416
    %v508 = vunpack.c.l.b16 %v417
    %v509 = vunpack.c.h.b16 %v417
    %v510 = vunpack.c.l.b16 %v418
    %v511 = vunpack.c.h.b16 %v418
    %v512 = vunpack.c.l.b16 %v419
    %v513 = vunpack.c.h.b16 %v419
    %v514 = vunpack.c.l.b16 %v420
    %v515 = vunpack.c.h.b16 %v420
    %v516 = vunpack.c.l.b16 %v421
    %v517 = vunpack.c.h.b16 %v421
    %v518 = vunpack.c.l.b16 %v422
    %v519 = vunpack.c.h.b16 %v422
    %v520 = vunpack.c.l.b16 %v423
    %v521 = vunpack.c.h.b16 %v423
    %v522 = vunpack.c.l.b16 %v424
    %v523 = vunpack.c.h.b16 %v424
    %v524 = vunpack.c.l.b16 %v425
    %v525 = vunpack.c.h.b16 %v425
    %v526 = vunpack.c.l.b16 %v426
    %v527 = vunpack.c.h.b16 %v426
    %v528 = vunpack.c.l.b16 %v427
    %v529 = vunpack.c.h.b16 %v427
    %v530 = vunpack.c.l.b16 %v428
    %v531 = vunpack.c.h.b16 %v428
    %v532 = vunpack.c.l.b16 %v429
    %v533 = vunpack.c.h.b16 %v429
    %v534 = vunpack.c.l.b16 %v430
    %v535 = vunpack.c.h.b16 %v430
    %v536 = vunpack.c.l.b16 %v431
    %v537 = vunpack.c.h.b16 %v431
    %v538 = vunpack.c.l.b16 %v432
    %v539 = vunpack.c.h.b16 %v432
    %v540 = vunpack.c.l.b16 %v433
    %v541 = vunpack.c.h.b16 %v433
    %v542 = vpack.c.b16 %v480, %v478
    %v543 = vpack.c.b16 %v481, %v479
    %v544 = vpack.c.b16 %v484, %v482
    %v545 = vpack.c.b16 %v485, %v483
    %v546 = vpack.c.b16 %v488, %v486
    %v547 = vpack.c.b16 %v489, %v487
    %v548 = vpack.c.b16 %v492, %v490
    %v549 = vpack.c.b16 %v493, %v491
    %v550 = vpack.c.b16 %v496, %v494
    %v551 = vpack.c.b16 %v497, %v495
    %v552 = vpack.c.b16 %v500, %v498
    %v553 = vpack.c.b16 %v501, %v499
    %v554 = vpack.c.b16 %v504, %v502
    %v555 = vpack.c.b16 %v505, %v503
    %v556 = vpack.c.b16 %v508, %v506
    %v557 = vpack.c.b16 %v509, %v507
    %v558 = vpack.c.b16 %v512, %v510
    %v559 = vpack.c.b16 %v513, %v511
    %v560 = vpack.c.b16 %v516, %v514
    %v561 = vpack.c.b16 %v517, %v515
    %v562 = vpack.c.b16 %v520, %v518
    %v563 = vpack.c.b16 %v521, %v519
    %v564 = vpack.c.b16 %v524, %v522
    %v565 = vpack.c.b16 %v525, %v523
    %v566 = vpack.c.b16 %v528, %v526
    %v567 = vpack.c.b16 %v529, %v527
    %v568 = vpack.c.b16 %v532, %v530
    %v569 = vpack.c.b16 %v533, %v531
    %v570 = vpack.c.b16 %v536, %v534
    %v571 = vpack.c.b16 %v537, %v535
    %v572 = vpack.c.b16 %v540, %v538
    %v573 = vpack.c.b16 %v541, %v539
    %606 = vmatprep.subr.bf16.mxu0 %v543
    %607 = vmatpush1.bf16.msra.mxu0 %v542
    %608 = vmatprep.subr.bf16.mxu0 %v545
    %609 = vmatpush1.bf16.msra.mxu0 %v544
    %610 = vmatprep.subr.bf16.mxu0 %v547
    %611 = vmatpush1.bf16.msra.mxu0 %v546
    %612 = vmatprep.subr.bf16.mxu0 %v549
    %613 = vmatpush1.bf16.msra.mxu0 %v548
    %614 = vmatprep.subr.bf16.mxu0 %v551
    %615 = vmatpush1.bf16.msra.mxu0 %v550
    %616 = vmatprep.subr.bf16.mxu0 %v553
    %617 = vmatpush1.bf16.msra.mxu0 %v552
    %618 = vmatprep.subr.bf16.mxu0 %v555
    %619 = vmatpush1.bf16.msra.mxu0 %v554
    %620 = vmatprep.subr.bf16.mxu0 %v557
    %621 = vmatpush1.bf16.msra.mxu0 %v556
    %622 = vmatprep.subr.bf16.mxu0 %v559
    %623 = vmatpush1.bf16.msra.mxu0 %v558
    %624 = vmatprep.subr.bf16.mxu0 %v561
    %625 = vmatpush1.bf16.msra.mxu0 %v560
    %626 = vmatprep.subr.bf16.mxu0 %v563
    %627 = vmatpush1.bf16.msra.mxu0 %v562
    %628 = vmatprep.subr.bf16.mxu0 %v565
    %629 = vmatpush1.bf16.msra.mxu0 %v564
    %630 = vmatprep.subr.bf16.mxu0 %v567
    %631 = vmatpush1.bf16.msra.mxu0 %v566
    %632 = vmatprep.subr.bf16.mxu0 %v569
    %633 = vmatpush1.bf16.msra.mxu0 %v568
    %634 = vmatprep.subr.bf16.mxu0 %v571
    %635 = vmatpush1.bf16.msra.mxu0 %v570
    %636 = vmatprep.subr.bf16.mxu0 %v573
    %637 = vmatpush1.bf16.msra.mxu0 %v572
    %638 = vmatprep.mubr.bf16.mxu0 %v401
    %639 = vmatmul.mubr.bf16.gmra.mrb[0].mxu0 %v400
    %v640 = vpop.f32.mrb[0].mxu0
    %v641 = vadd.f32 %v439, %v640
    %v642 = vpop.f32.mrb[0].mxu0
    %v643 = vadd.f32 %v443, %v642
    %v644 = vpop.f32.mrb[0].mxu0
    %v645 = vpop.f32.mrb[0].mxu0
    %646 = vdwg.mxu0
    %v647 = vmax.f32 %v641, 0.0
    %v648 = vmax.f32 %v643, 0.0
    %v649 = vld [vmem:[%s7] sm:$0x3]
    %v651 = vlaneseq
    %v652 = vshrl.u32 %v651, 7
    %v653 = vsub.s32 0, %v652
    %v654 = vrot.slane %v649, %v653
    %v655 = vlaneseq
    %v656 = vshrl.u32 %v655, 7
    %v657 = vsub.s32 1, %v656
    %v658 = vrot.slane %v649, %v657
    %v661 = vmul.f32 %v647, %v654
    %v662 = vmul.f32 %v648, %v658
    %v663 = vadd.f32 %v661, %v662
    %664 = vadd.xlane.f32.xlu0 %v663
    %v665 = vpop.xlane.xlu0 %664
    %v666 = vld [vmem:[#allocation2] sm:$0x1]
    %v668 = vlaneseq
    %v669 = vshrl.u32 %v668, 7
    %v670 = vsub.s32 0, %v669
    %v671 = vrot.slane %v666, %v670
    %v673 = vadd.f32 %v665, %v671
    %vm674 = vcmask 7168
    %675 = vst.msk [vmem:[%s9] sm:$0xff] %vm674, %v673
    // Predicated region
    $region46: #{critic_forward.1} parent=1 // pred_check
      _
    $region47: #{critic_forward.1} parent=1 // pred_check_branch
      %677 = sbr.rel (0) target = $region49
    $region48: #{critic_forward.1} parent=1 // pred_region
      _
    $region49: #{critic_forward.1} parent=1 // pred_fallthru
      _
    // Predicated region
    $region50: #{critic_forward.1} parent=1 // pred_check
      _
    $region51: #{critic_forward.1} parent=1 // pred_check_branch
      %679 = sbr.rel (0) target = $region53
    $region52: #{critic_forward.1} parent=1 // pred_region
      _
    $region53: #{critic_forward.1} parent=1 // pred_fallthru
      _
    %680 = vsyncpa [#allocation4], 1
    %681 = vsyncpa [#allocation6], 1

</llo_original>
